<compile_context>
chip_gen: v6e
topology: v6e:2x2x1
jax: 0.10.0
libtpu: 0.0.40
codegen_flags: <defaults>
</compile_context>

<pallas_src>
import functools

import jax
import jax.numpy as jnp
from jax.experimental import pallas as pl
from jax.experimental.pallas import tpu as pltpu


def _round_up(x, m):
    return ((x + m - 1) // m) * m


# ---------------------------------------------------------------------------
# Kernel
# ---------------------------------------------------------------------------
def _critic_kernel(xT_ref, p_ref, q_ref, *, k, n1, n2, n3, band):
    """One batch tile for H critic heads (H = 1 or 2, statically unrolled).

    xT_ref : (k, TB)            packed [state; action]^T tile, batch on lanes
    p_ref  : (H*band, cols)     packed parameter slab, VMEM-resident across steps
                                rows [h*band : h*band+n1]      -> W1 | b1
                                rows [.. +n1 : .. +n1+n2]      -> W2 | b2
                                rows [.. +n1+n2 : .. +n1+n2+n3]-> W3 | b3
                                (weights in cols [0:in_dim], bias in last col)
    q_ref  : (H*n3, TB)
    """
    x = xT_ref[...]                                   # (k, TB)
    cols = p_ref.shape[1]
    num_heads = q_ref.shape[0] // n3

    for h in range(num_heads):                        # static unroll
        r0 = h * band
        w1 = p_ref[r0:r0 + n1, 0:k]                   # (n1, k)
        b1 = p_ref[r0:r0 + n1, cols - 1:cols]         # (n1, 1) -> bcast over lanes
        w2 = p_ref[r0 + n1:r0 + n1 + n2, 0:n1]        # (n2, n1)
        b2 = p_ref[r0 + n1:r0 + n1 + n2, cols - 1:cols]
        w3 = p_ref[r0 + n1 + n2:r0 + n1 + n2 + n3, 0:n2]          # (n3, n2)
        b3 = p_ref[r0 + n1 + n2:r0 + n1 + n2 + n3, cols - 1:cols]

        # fc1: (n1, k) @ (k, TB) -> (n1, TB)     (single K=sd+ad MXU dot)
        h1 = jnp.dot(w1, x, preferred_element_type=jnp.float32) + b1
        h1 = jnp.maximum(h1, 0.0)
        # fc2: (n2, n1) @ (n1, TB) -> (n2, TB)
        h2 = jnp.dot(w2, h1, preferred_element_type=jnp.float32) + b2
        h2 = jnp.maximum(h2, 0.0)
        # fc3: (n3, n2) @ (n2, TB) -> (n3, TB); lane-dense store
        q = jnp.dot(w3, h2, preferred_element_type=jnp.float32) + b3
        q_ref[h * n3:(h + 1) * n3, :] = q


# ---------------------------------------------------------------------------
# Parameter packing: one resident slab for 1..N critic heads
# ---------------------------------------------------------------------------
def pack_critic_params(*params_list, dtype=jnp.float32):
    """Pack one or more (w1,b1,w2,b2,w3,b3) PyTorch-layout tuples into a single
    2-D slab.  Weights live in columns [0:in_dim], biases in the last column;
    each head occupies a sublane-aligned (multiple-of-8) row band.  Pack once
    outside the hot loop when parameters are static across calls."""
    w1, _, w2, _, w3, _ = params_list[0]
    n1, k = w1.shape
    n2 = w2.shape[0]
    n3 = w3.shape[0]
    cols = max(k, n1, n2) + 1
    band = _round_up(n1 + n2 + n3, 8)

    slabs = []
    for (w1, b1, w2, b2, w3, b3) in params_list:
        s = jnp.zeros((band, cols), dtype)
        s = s.at[0:n1, 0:k].set(w1.astype(dtype))
        s = s.at[0:n1, cols - 1].set(b1.astype(dtype))
        s = s.at[n1:n1 + n2, 0:n1].set(w2.astype(dtype))
        s = s.at[n1:n1 + n2, cols - 1].set(b2.astype(dtype))
        s = s.at[n1 + n2:n1 + n2 + n3, 0:n2].set(w3.astype(dtype))
        s = s.at[n1 + n2:n1 + n2 + n3, cols - 1].set(b3.astype(dtype))
        slabs.append(s)
    slab = jnp.concatenate(slabs, axis=0)
    meta = dict(k=k, n1=n1, n2=n2, n3=n3, band=band, num_heads=len(params_list))
    return slab, meta


# ---------------------------------------------------------------------------
# pallas_call driver
# ---------------------------------------------------------------------------
def _critic_call(xT, slab, meta, B, tb):
    k, n1, n2, n3 = meta["k"], meta["n1"], meta["n2"], meta["n3"]
    H, band = meta["num_heads"], meta["band"]

    # Tile selection: clamp to the (128-rounded) batch so tiny batches don't
    # compute dead lanes; large default tile amortizes ~0.35us/step overhead.
    B_lane = _round_up(B, 128)
    tb = max(128, min(_round_up(tb, 128), B_lane))
    n_blocks = pl.cdiv(B_lane, tb)
    if n_blocks == 1 and B_lane >= 2048:
        # v7x has 2 TensorCores: keep >=2 "parallel" steps so both are used.
        # One extra step is noise on single-TC v5e/v6e at this size.
        n_blocks = 2
    tb = _round_up(pl.cdiv(B_lane, n_blocks), 128)   # even tiles, minimal padding
    B_pad = n_blocks * tb

    if B_pad != xT.shape[1]:
        xT = jnp.pad(xT, ((0, 0), (0, B_pad - xT.shape[1])))

    rows = H * n3
    kernel = functools.partial(_critic_kernel, k=k, n1=n1, n2=n2, n3=n3, band=band)

    out = pl.pallas_call(
        kernel,
        out_shape=jax.ShapeDtypeStruct((rows, B_pad), jnp.float32),
        grid_spec=pltpu.PrefetchScalarGridSpec(
            num_scalar_prefetch=0,
            grid=(n_blocks,),
            in_specs=[
                # activation stream: (sd+ad, tb) tile per step, double-buffered
                pl.BlockSpec((k, tb), lambda i: (0, i)),
                # packed params: constant index_map -> VMEM-resident, one DMA
                pl.BlockSpec(slab.shape, lambda i: (0, 0)),
            ],
            out_specs=pl.BlockSpec((rows, tb), lambda i: (0, i)),
        ),
        compiler_params=pltpu.CompilerParams(
            dimension_semantics=("parallel",)),
    )(xT, slab)

    return out[:, :B]                                  # (rows, B)


# ---------------------------------------------------------------------------
# Public forwards
# ---------------------------------------------------------------------------
def critic_forward(state, action, params, *, tb=2048):
    """Single critic (matches the PyTorch module): (B, sd), (B, ad) -> (B, 1)."""
    B = state.shape[0]
    slab, meta = pack_critic_params(params)
    # Single fused [state | action]^T operand (replaces concat + 2 transposes + split).
    xT = jnp.concatenate([state, action], axis=1).astype(jnp.float32).T   # (k, B)
    q = _critic_call(xT, slab, meta, B, tb)                                # (1, B)
    return q.T                                                             # (B, 1)


def twin_critic_forward(state, action, params1, params2, *, tb=2048):
    """TD3 twin critics (Q1, Q2) fused into one pallas_call."""
    B = state.shape[0]
    slab, meta = pack_critic_params(params1, params2)
    xT = jnp.concatenate([state, action], axis=1).astype(jnp.float32).T
    q = _critic_call(xT, slab, meta, B, tb)                                # (2, B)
    return q[0:1].T, q[1:2].T                                              # (B,1) each


# ---------------------------------------------------------------------------
# Init (PyTorch nn.Linear default: U[-1/sqrt(fan_in), 1/sqrt(fan_in)])
# ---------------------------------------------------------------------------
def init_critic_params(key, state_dim, action_dim):
    dims = [(state_dim + action_dim, 32), (32, 16), (16, 1)]
    params = []
    for fan_in, fan_out in dims:
        key, kw, kb = jax.random.split(key, 3)
        bound = 1.0 / (fan_in ** 0.5)
        w = jax.random.uniform(kw, (fan_out, fan_in), jnp.float32, -bound, bound)
        b = jax.random.uniform(kb, (fan_out,), jnp.float32, -bound, bound)
        params += [w, b]
    return tuple(params)


if __name__ == "__main__":
    state_dim = 3    # Pendulum-v1 observation dim
    action_dim = 1
    batch = 8

    key = jax.random.PRNGKey(0)
    key, ks, ka, kp1, kp2 = jax.random.split(key, 5)
    state = jax.random.normal(ks, (batch, state_dim), jnp.float32)
    action = jax.random.normal(ka, (batch, action_dim), jnp.float32)
    params1 = init_critic_params(kp1, state_dim, action_dim)
    params2 = init_critic_params(kp2, state_dim, action_dim)

    def ref_forward(params, state, action):
        w1, b1, w2, b2, w3, b3 = params
        sa = jnp.concatenate([state, action], axis=1)
        h = jnp.maximum(sa @ w1.T + b1, 0.0)
        h = jnp.maximum(h @ w2.T + b2, 0.0)
        return h @ w3.T + b3

    # Single critic (the PyTorch module's forward).
    q = jax.block_until_ready(critic_forward(state, action, params1))
    assert q.shape == (batch, 1)
    assert jnp.allclose(q, ref_forward(params1, state, action), atol=1e-5), \
        "single-critic mismatch vs reference"

    # Twin critics fused in one pallas_call (TD3 training-step path).
    q1, q2 = twin_critic_forward(state, action, params1, params2)
    q1 = jax.block_until_ready(q1)
    q2 = jax.block_until_ready(q2)
    assert jnp.allclose(q1, ref_forward(params1, state, action), atol=1e-5), \
        "twin-critic Q1 mismatch vs reference"
    assert jnp.allclose(q2, ref_forward(params2, state, action), atol=1e-5), \
        "twin-critic Q2 mismatch vs reference"

    print("KERNEL_OK")
</pallas_src>

<mosaic_0001>
module attributes {stable_mosaic.version = 11 : i64} {
  func.func @_critic_kernel(%arg0: i32, %arg1: memref<4x128xf32, #tpu.memory_space<vmem>>, %arg2: memref<56x33xf32, #tpu.memory_space<vmem>>, %arg3: memref<1x128xf32, #tpu.memory_space<vmem>>) attributes {dimension_semantics = [#tpu.dimension_semantics<parallel>], iteration_bounds = array<i64: 1>, scalar_prefetch = 0 : i64, scratch_operands = 0 : i64, tpu.core_type = #tpu.core_type<tc>, window_params = [{transform_indices = @transform_0, window_bounds = array<i64: 4, 128>}, {pipeline_mode = #tpu.pipeline_mode<synchronous>, transform_indices = @transform_1, window_bounds = array<i64: 56, 33>}, {transform_indices = @transform_2, window_bounds = array<i64: 1, 128>}]} {
    %c0 = arith.constant 0 : index
    %c0_0 = arith.constant 0 : index
    %0 = vector.load %arg1[%c0, %c0_0] : memref<4x128xf32, #tpu.memory_space<vmem>>, vector<4x128xf32>
    %c0_1 = arith.constant 0 : index
    %c0_2 = arith.constant 0 : index
    %1 = vector.load %arg2[%c0_1, %c0_2] : memref<56x33xf32, #tpu.memory_space<vmem>>, vector<32x4xf32>
    %c0_3 = arith.constant 0 : index
    %c32 = arith.constant 32 : index
    %2 = vector.load %arg2[%c0_3, %c32] : memref<56x33xf32, #tpu.memory_space<vmem>>, vector<32x1xf32>
    %c32_4 = arith.constant 32 : index
    %c0_5 = arith.constant 0 : index
    %3 = vector.load %arg2[%c32_4, %c0_5] : memref<56x33xf32, #tpu.memory_space<vmem>>, vector<16x32xf32>
    %c32_6 = arith.constant 32 : index
    %c32_7 = arith.constant 32 : index
    %4 = vector.load %arg2[%c32_6, %c32_7] : memref<56x33xf32, #tpu.memory_space<vmem>>, vector<16x1xf32>
    %c48 = arith.constant 48 : index
    %c0_8 = arith.constant 0 : index
    %5 = vector.load %arg2[%c48, %c0_8] : memref<56x33xf32, #tpu.memory_space<vmem>>, vector<1x16xf32>
    %c48_9 = arith.constant 48 : index
    %c32_10 = arith.constant 32 : index
    %6 = vector.load %arg2[%c48_9, %c32_10] : memref<56x33xf32, #tpu.memory_space<vmem>>, vector<1x1xf32>
    %cst = arith.constant dense<0.000000e+00> : vector<32x128xf32>
    %7 = tpu.matmul %1, %0, %cst {dimension_numbers = #tpu.dot_dimension_numbers<[1], [0], [0], [1], [0, 0, 1, 1], [], []>} : vector<32x4xf32>, vector<4x128xf32>, vector<32x128xf32> -> vector<32x128xf32>
    %8 = vector.broadcast %2 : vector<32x1xf32> to vector<32x128xf32>
    %9 = arith.addf %7, %8 : vector<32x128xf32>
    %cst_11 = arith.constant 0.000000e+00 : f32
    %10 = vector.broadcast %cst_11 : f32 to vector<32x128xf32>
    %11 = arith.maximumf %9, %10 : vector<32x128xf32>
    %cst_12 = arith.constant dense<0.000000e+00> : vector<16x128xf32>
    %12 = tpu.matmul %3, %11, %cst_12 {dimension_numbers = #tpu.dot_dimension_numbers<[1], [0], [0], [1], [0, 0, 1, 1], [], []>} : vector<16x32xf32>, vector<32x128xf32>, vector<16x128xf32> -> vector<16x128xf32>
    %13 = vector.broadcast %4 : vector<16x1xf32> to vector<16x128xf32>
    %14 = arith.addf %12, %13 : vector<16x128xf32>
    %cst_13 = arith.constant 0.000000e+00 : f32
    %15 = vector.broadcast %cst_13 : f32 to vector<16x128xf32>
    %16 = arith.maximumf %14, %15 : vector<16x128xf32>
    %cst_14 = arith.constant dense<0.000000e+00> : vector<1x128xf32>
    %17 = tpu.matmul %5, %16, %cst_14 {dimension_numbers = #tpu.dot_dimension_numbers<[1], [0], [0], [1], [0, 0, 1, 1], [], []>} : vector<1x16xf32>, vector<16x128xf32>, vector<1x128xf32> -> vector<1x128xf32>
    %18 = vector.broadcast %6 : vector<1x1xf32> to vector<1x128xf32>
    %19 = arith.addf %17, %18 : vector<1x128xf32>
    %c0_15 = arith.constant 0 : index
    %c0_16 = arith.constant 0 : index
    %20 = vector.load %arg3[%c0_15, %c0_16] : memref<1x128xf32, #tpu.memory_space<vmem>>, vector<1x128xf32>
    tpu.vector_store %arg3[%c0_15, %c0_16], %19 {strides = array<i32>} : memref<1x128xf32, #tpu.memory_space<vmem>>, vector<1x128xf32>,
    return
  }
  func.func @transform_0(%arg0: i32) -> (i32, i32) {
    %c0_i32 = arith.constant 0 : i32
    %c0_i32_0 = arith.constant 0 : i32
    return %c0_i32, %arg0 : i32, i32
  }
  func.func @transform_1(%arg0: i32) -> (i32, i32) {
    %c0_i32 = arith.constant 0 : i32
    %c0_i32_0 = arith.constant 0 : i32
    %c0_i32_1 = arith.constant 0 : i32
    return %c0_i32, %c0_i32_0 : i32, i32
  }
  func.func @transform_2(%arg0: i32) -> (i32, i32) {
    %c0_i32 = arith.constant 0 : i32
    %c0_i32_0 = arith.constant 0 : i32
    return %c0_i32, %arg0 : i32, i32
  }
}

</mosaic_0001>

<llo_original>
// kernel: tpu_custom_call.1
$region0: #{tpu_custom_call.1}
  #allocation0 [shape = 'u32[]', space=smem, size = 0x4, offset = 0x4, fixed_abs, tag = 'smem constant byte address 0x4 - core index']
  #allocation1 [shape = 'u32[144,128]{1,0:T(1,128)}', space=vmem, size = 0x12000, scoped, tag = 'internal scratch']
  %s0 = inlined_call_operand.vmem [shape: f32[4,128], index: 0, kind: input, shape index: {}]
  %s1 = inlined_call_operand.vmem [shape: f32[56,33], index: 1, kind: input, shape index: {}]
  %s2 = inlined_call_operand.hbm [shape: f32[1,128], index: 2, kind: output, shape index: {}]
  %s3 = sld [smem:[#allocation0]]
  $region18: #{tpu_custom_call.1} parent=0
    _
  %s5 = ssub.s32 1, %s3
  %s6 = scalar_select 0, %s5, %s3
  $region1: #{tpu_custom_call.1} parent=0
    #allocation2 [shape = 'u8[512]{0}', space=vmem, size = 0x400, scoped, tag = 'output window, operand 0, single buffered']
    #allocation3 [shape = 's32[1]{0}', space=sflag, size = 0x4, scoped, tag = 'scoped memory for tpu_custom_call.1']
    %7 = vsyncpa [#allocation3], 0
    // Predicated region
    $region2: #{tpu_custom_call.1} parent=1 // pred_check
      _
    $region3: #{tpu_custom_call.1} parent=1 // pred_check_branch
      %9 = sbr.rel (0) target = $region5
    $region4: #{tpu_custom_call.1} parent=1 // pred_region
      _
    $region5: #{tpu_custom_call.1} parent=1 // pred_fallthru
      _
    // Predicated region
    $region6: #{tpu_custom_call.1} parent=1 // pred_check
      _
    $region7: #{tpu_custom_call.1} parent=1 // pred_check_branch
      %11 = sbr.rel (0) target = $region9
    $region8: #{tpu_custom_call.1} parent=1 // pred_region
      _
    $region9: #{tpu_custom_call.1} parent=1 // pred_fallthru
      _
    %v12 = vld [vmem:[%s0] sm:$0xf]
    %v13 = vld [vmem:[%s1] sm:$0xff]
    %v14 = vld [vmem:[%s1 + $0x8] sm:$0xff]
    %v15 = vld [vmem:[%s1 + $0x10] sm:$0xff]
    %v16 = vld [vmem:[%s1 + $0x18] sm:$0xff]
    %v17 = vld [vmem:[%s1 + $0x20] sm:$0xff]
    %v18 = vld [vmem:[%s1 + $0x28] sm:$0xff]
    %v19 = vld [vmem:[%s1 + $0x30] sm:$0x1]
    %21 = vset.pattern.permute.xlu0 32
    %22 = vperm.xlu0 %21, %v13
    %v23 = vpop.permute.xlu0 %22
    %26 = vset.pattern.permute.xlu0 32
    %27 = vperm.xlu0 %26, %v14
    %v28 = vpop.permute.xlu0 %27
    %31 = vset.pattern.permute.xlu0 32
    %32 = vperm.xlu0 %31, %v15
    %v33 = vpop.permute.xlu0 %32
    %36 = vset.pattern.permute.xlu0 32
    %37 = vperm.xlu0 %36, %v16
    %v38 = vpop.permute.xlu0 %37
    %vm40 = vcmask 31744
    %v41 = vsel %vm40, %v13, 0
    %v43 = vsel %vm40, %v14, 0
    %v45 = vsel %vm40, %v15, 0
    %v47 = vsel %vm40, %v16, 0
    %vm49 = vcmask 1043456
    %v51 = vsel %vm49, %v12, 0
    %53 = vmatprep.subr.mxu0 0.0
    %54 = vmatpush1.msra.mxu0 0.0
    %55 = vmatprep.subr.mxu0 0.0
    %56 = vmatpush1.msra.mxu0 0.0
    %57 = vmatprep.subr.mxu0 0.0
    %58 = vmatpush1.msra.mxu0 0.0
    %59 = vmatprep.subr.mxu0 0.0
    %60 = vmatpush1.msra.mxu0 0.0
    %61 = vmatprep.subr.mxu0 0.0
    %62 = vmatpush1.msra.mxu0 0.0
    %63 = vmatprep.subr.mxu0 0.0
    %64 = vmatpush1.msra.mxu0 0.0
    %65 = vmatprep.subr.mxu0 0.0
    %66 = vmatpush1.msra.mxu0 0.0
    %67 = vmatprep.subr.mxu0 0.0
    %68 = vmatpush1.msra.mxu0 0.0
    %69 = vmatprep.subr.mxu0 0.0
    %70 = vmatpush1.msra.mxu0 0.0
    %71 = vmatprep.subr.mxu0 0.0
    %72 = vmatpush1.msra.mxu0 0.0
    %73 = vmatprep.subr.mxu0 0.0
    %74 = vmatpush1.msra.mxu0 0.0
    %75 = vmatprep.subr.mxu0 0.0
    %76 = vmatpush1.msra.mxu0 0.0
    %77 = vmatprep.subr.mxu0 0.0
    %78 = vmatpush1.msra.mxu0 0.0
    %79 = vmatprep.subr.mxu0 0.0
    %80 = vmatpush1.msra.mxu0 0.0
    %81 = vmatprep.subr.mxu0 0.0
    %82 = vmatpush1.msra.mxu0 0.0
    %83 = vmatprep.subr.mxu0 0.0
    %84 = vmatpush1.msra.mxu0 %v51
    %85 = vmatprep.subr.mxu0 0.0
    %86 = vmatpush2.msra.mxu0 0.0
    %87 = vmatprep.subr.mxu0 0.0
    %88 = vmatpush2.msra.mxu0 0.0
    %89 = vmatprep.subr.mxu0 0.0
    %90 = vmatpush2.msra.mxu0 0.0
    %91 = vmatprep.subr.mxu0 0.0
    %92 = vmatpush2.msra.mxu0 0.0
    %93 = vmatprep.subr.mxu0 0.0
    %94 = vmatpush2.msra.mxu0 0.0
    %95 = vmatprep.subr.mxu0 0.0
    %96 = vmatpush2.msra.mxu0 0.0
    %97 = vmatprep.subr.mxu0 0.0
    %98 = vmatpush2.msra.mxu0 0.0
    %99 = vmatprep.subr.mxu0 0.0
    %100 = vmatpush2.msra.mxu0 0.0
    %101 = vmatprep.subr.mxu0 0.0
    %102 = vmatpush2.msra.mxu0 0.0
    %103 = vmatprep.subr.mxu0 0.0
    %104 = vmatpush2.msra.mxu0 0.0
    %105 = vmatprep.subr.mxu0 0.0
    %106 = vmatpush2.msra.mxu0 0.0
    %107 = vmatprep.subr.mxu0 0.0
    %108 = vmatpush2.msra.mxu0 0.0
    %109 = vmatprep.subr.mxu0 0.0
    %110 = vmatpush2.msra.mxu0 0.0
    %111 = vmatprep.subr.mxu0 0.0
    %112 = vmatpush2.msra.mxu0 0.0
    %113 = vmatprep.subr.mxu0 0.0
    %114 = vmatpush2.msra.mxu0 0.0
    %115 = vmatprep.subr.mxu0 0.0
    %116 = vmatpush2.msra.mxu0 0.0
    %117 = vmatprep.mubr.f32.mxu0 0.0
    %118 = vmatmul.mubr.f32.gmra.mxu0 %v41
    %v119 = vpop.f32.mrf.mxu0
    %v120 = vadd.f32 %v23, %v119
    %v121 = vpop.f32.mrf.mxu0
    %122 = vmatprep.mubr.f32.mxu0 0.0
    %123 = vmatmul.mubr.f32.gmra.mxu0 %v43
    %v124 = vpop.f32.mrf.mxu0
    %v125 = vadd.f32 %v28, %v124
    %v126 = vpop.f32.mrf.mxu0
    %127 = vmatprep.mubr.f32.mxu0 0.0
    %128 = vmatmul.mubr.f32.gmra.mxu0 %v45
    %v129 = vpop.f32.mrf.mxu0
    %v130 = vadd.f32 %v33, %v129
    %v131 = vpop.f32.mrf.mxu0
    %132 = vmatprep.mubr.f32.mxu0 0.0
    %133 = vmatmul.mubr.f32.gmra.mxu0 %v47
    %v134 = vpop.f32.mrf.mxu0
    %v135 = vadd.f32 %v38, %v134
    %v136 = vpop.f32.mrf.mxu0
    %137 = vdwg.mxu0
    %v138 = vmax.f32 %v120, 0.0
    %v139 = vmax.f32 %v125, 0.0
    %v140 = vmax.f32 %v130, 0.0
    %v141 = vmax.f32 %v135, 0.0
    %143 = vset.pattern.permute.xlu0 32
    %144 = vperm.xlu0 %143, %v17
    %v145 = vpop.permute.xlu0 %144
    %148 = vset.pattern.permute.xlu0 32
    %149 = vperm.xlu0 %148, %v18
    %v150 = vpop.permute.xlu0 %149
    %vm152 = vcmask 261120
    %v153 = vsel %vm152, %v17, 0
    %v155 = vsel %vm152, %v18, 0
    %157 = vmatprep.subr.mxu0 0.0
    %158 = vmatpush1.msra.mxu0 0.0
    %159 = vmatprep.subr.mxu0 0.0
    %160 = vmatpush1.msra.mxu0 0.0
    %161 = vmatprep.subr.mxu0 0.0
    %162 = vmatpush1.msra.mxu0 0.0
    %163 = vmatprep.subr.mxu0 0.0
    %164 = vmatpush1.msra.mxu0 0.0
    %165 = vmatprep.subr.mxu0 0.0
    %166 = vmatpush1.msra.mxu0 0.0
    %167 = vmatprep.subr.mxu0 0.0
    %168 = vmatpush1.msra.mxu0 0.0
    %169 = vmatprep.subr.mxu0 0.0
    %170 = vmatpush1.msra.mxu0 0.0
    %171 = vmatprep.subr.mxu0 0.0
    %172 = vmatpush1.msra.mxu0 0.0
    %173 = vmatprep.subr.mxu0 0.0
    %174 = vmatpush1.msra.mxu0 0.0
    %175 = vmatprep.subr.mxu0 0.0
    %176 = vmatpush1.msra.mxu0 0.0
    %177 = vmatprep.subr.mxu0 0.0
    %178 = vmatpush1.msra.mxu0 0.0
    %179 = vmatprep.subr.mxu0 0.0
    %180 = vmatpush1.msra.mxu0 0.0
    %181 = vmatprep.subr.mxu0 0.0
    %182 = vmatpush1.msra.mxu0 %v141
    %183 = vmatprep.subr.mxu0 0.0
    %184 = vmatpush1.msra.mxu0 %v140
    %185 = vmatprep.subr.mxu0 0.0
    %186 = vmatpush1.msra.mxu0 %v139
    %187 = vmatprep.subr.mxu0 0.0
    %188 = vmatpush1.msra.mxu0 %v138
    %189 = vmatprep.subr.mxu0 0.0
    %190 = vmatpush2.msra.mxu0 0.0
    %191 = vmatprep.subr.mxu0 0.0
    %192 = vmatpush2.msra.mxu0 0.0
    %193 = vmatprep.subr.mxu0 0.0
    %194 = vmatpush2.msra.mxu0 0.0
    %195 = vmatprep.subr.mxu0 0.0
    %196 = vmatpush2.msra.mxu0 0.0
    %197 = vmatprep.subr.mxu0 0.0
    %198 = vmatpush2.msra.mxu0 0.0
    %199 = vmatprep.subr.mxu0 0.0
    %200 = vmatpush2.msra.mxu0 0.0
    %201 = vmatprep.subr.mxu0 0.0
    %202 = vmatpush2.msra.mxu0 0.0
    %203 = vmatprep.subr.mxu0 0.0
    %204 = vmatpush2.msra.mxu0 0.0
    %205 = vmatprep.subr.mxu0 0.0
    %206 = vmatpush2.msra.mxu0 0.0
    %207 = vmatprep.subr.mxu0 0.0
    %208 = vmatpush2.msra.mxu0 0.0
    %209 = vmatprep.subr.mxu0 0.0
    %210 = vmatpush2.msra.mxu0 0.0
    %211 = vmatprep.subr.mxu0 0.0
    %212 = vmatpush2.msra.mxu0 0.0
    %213 = vmatprep.subr.mxu0 0.0
    %214 = vmatpush2.msra.mxu0 0.0
    %215 = vmatprep.subr.mxu0 0.0
    %216 = vmatpush2.msra.mxu0 0.0
    %217 = vmatprep.subr.mxu0 0.0
    %218 = vmatpush2.msra.mxu0 0.0
    %219 = vmatprep.subr.mxu0 0.0
    %220 = vmatpush2.msra.mxu0 0.0
    %221 = vmatprep.mubr.f32.mxu0 0.0
    %222 = vmatmul.mubr.f32.gmra.mxu0 %v153
    %v223 = vpop.f32.mrf.mxu0
    %v224 = vadd.f32 %v145, %v223
    %v225 = vpop.f32.mrf.mxu0
    %226 = vmatprep.mubr.f32.mxu0 0.0
    %227 = vmatmul.mubr.f32.gmra.mxu0 %v155
    %v228 = vpop.f32.mrf.mxu0
    %v229 = vadd.f32 %v150, %v228
    %v230 = vpop.f32.mrf.mxu0
    %231 = vdwg.mxu0
    %v232 = vmax.f32 %v224, 0.0
    %v233 = vmax.f32 %v229, 0.0
    %235 = vset.pattern.permute.xlu0 32
    %236 = vperm.xlu0 %235, %v19
    %v237 = vpop.permute.xlu0 %236
    %vm239 = vcmask 130048
    %v240 = vsel %vm239, %v19, 0
    %242 = vmatprep.subr.mxu0 0.0
    %243 = vmatpush1.msra.mxu0 0.0
    %244 = vmatprep.subr.mxu0 0.0
    %245 = vmatpush1.msra.mxu0 0.0
    %246 = vmatprep.subr.mxu0 0.0
    %247 = vmatpush1.msra.mxu0 0.0
    %248 = vmatprep.subr.mxu0 0.0
    %249 = vmatpush1.msra.mxu0 0.0
    %250 = vmatprep.subr.mxu0 0.0
    %251 = vmatpush1.msra.mxu0 0.0
    %252 = vmatprep.subr.mxu0 0.0
    %253 = vmatpush1.msra.mxu0 0.0
    %254 = vmatprep.subr.mxu0 0.0
    %255 = vmatpush1.msra.mxu0 0.0
    %256 = vmatprep.subr.mxu0 0.0
    %257 = vmatpush1.msra.mxu0 0.0
    %258 = vmatprep.subr.mxu0 0.0
    %259 = vmatpush1.msra.mxu0 0.0
    %260 = vmatprep.subr.mxu0 0.0
    %261 = vmatpush1.msra.mxu0 0.0
    %262 = vmatprep.subr.mxu0 0.0
    %263 = vmatpush1.msra.mxu0 0.0
    %264 = vmatprep.subr.mxu0 0.0
    %265 = vmatpush1.msra.mxu0 0.0
    %266 = vmatprep.subr.mxu0 0.0
    %267 = vmatpush1.msra.mxu0 0.0
    %268 = vmatprep.subr.mxu0 0.0
    %269 = vmatpush1.msra.mxu0 0.0
    %270 = vmatprep.subr.mxu0 0.0
    %271 = vmatpush1.msra.mxu0 %v233
    %272 = vmatprep.subr.mxu0 0.0
    %273 = vmatpush1.msra.mxu0 %v232
    %274 = vmatprep.subr.mxu0 0.0
    %275 = vmatpush2.msra.mxu0 0.0
    %276 = vmatprep.subr.mxu0 0.0
    %277 = vmatpush2.msra.mxu0 0.0
    %278 = vmatprep.subr.mxu0 0.0
    %279 = vmatpush2.msra.mxu0 0.0
    %280 = vmatprep.subr.mxu0 0.0
    %281 = vmatpush2.msra.mxu0 0.0
    %282 = vmatprep.subr.mxu0 0.0
    %283 = vmatpush2.msra.mxu0 0.0
    %284 = vmatprep.subr.mxu0 0.0
    %285 = vmatpush2.msra.mxu0 0.0
    %286 = vmatprep.subr.mxu0 0.0
    %287 = vmatpush2.msra.mxu0 0.0
    %288 = vmatprep.subr.mxu0 0.0
    %289 = vmatpush2.msra.mxu0 0.0
    %290 = vmatprep.subr.mxu0 0.0
    %291 = vmatpush2.msra.mxu0 0.0
    %292 = vmatprep.subr.mxu0 0.0
    %293 = vmatpush2.msra.mxu0 0.0
    %294 = vmatprep.subr.mxu0 0.0
    %295 = vmatpush2.msra.mxu0 0.0
    %296 = vmatprep.subr.mxu0 0.0
    %297 = vmatpush2.msra.mxu0 0.0
    %298 = vmatprep.subr.mxu0 0.0
    %299 = vmatpush2.msra.mxu0 0.0
    %300 = vmatprep.subr.mxu0 0.0
    %301 = vmatpush2.msra.mxu0 0.0
    %302 = vmatprep.subr.mxu0 0.0
    %303 = vmatpush2.msra.mxu0 0.0
    %304 = vmatprep.subr.mxu0 0.0
    %305 = vmatpush2.msra.mxu0 0.0
    %306 = vmatprep.mubr.f32.mxu0 0.0
    %307 = vmatmul.mubr.f32.gmra.mxu0 %v240
    %v308 = vpop.f32.mrf.mxu0
    %v309 = vadd.f32 %v237, %v308
    %v310 = vpop.f32.mrf.mxu0
    %311 = vdwg.mxu0
    %312 = vst [vmem:[#allocation2] sm:$0x1] %v309
    // Predicated region
    $region10: #{tpu_custom_call.1} parent=1 // pred_check
      _
    $region11: #{tpu_custom_call.1} parent=1 // pred_check_branch
      %314 = sbr.rel (0) target = $region13
    $region12: #{tpu_custom_call.1} parent=1 // pred_region
      %s316 = ssub.s32 16, 16
      %317 = vsyncadd [#allocation3], %s316
      %s319 = sshll.u32 [#allocation2], 4
      %s320 = int_to_ptr.vmem [resolvable:$true] %s319
      %322 = dma.vmem_to_hbm [thread:$0]  %s320, 16, %s2, [#allocation3]
    $region13: #{tpu_custom_call.1} parent=1 // pred_fallthru
      _
    // Predicated region
    $region14: #{tpu_custom_call.1} parent=1 // pred_check
      _
    $region15: #{tpu_custom_call.1} parent=1 // pred_check_branch
      %324 = sbr.rel (0) target = $region17
    $region16: #{tpu_custom_call.1} parent=1 // pred_region
      %325 = dma.done [#allocation3], 16
    $region17: #{tpu_custom_call.1} parent=1 // pred_fallthru
      _
    %326 = vsyncpa [#allocation3], 1

</llo_original>
